<compile_context>
chip_gen: v7x
topology: tpu7x:2x2x1
jax: 0.10.0
libtpu: 0.0.40
codegen_flags: <defaults>
</compile_context>

<pallas_src>
import functools

import jax
import jax.numpy as jnp
from jax import lax
from jax.experimental import pallas as pl
from jax.experimental.pallas import tpu as pltpu


def _round_up(x, m):
    return ((x + m - 1) // m) * m


def _make_kernel(seq_len, ragged_s):
    """Builds the kernel closure. seq_len / ragged_s are static Python values."""

    def kernel(spans_ref, mask_ref, seq_ref, out_ref):
        # spans_ref: (1, tN, 2) int32   [start, end_exclusive]
        # mask_ref:  (1, tN, 1) f32     span_indices_mask (ones when not provided)
        # seq_ref:   (1, tS, tE) float  (native or bf16 compute dtype)
        # out_ref:   (1, tN, tE) f32    resident across the S (reduction) grid axis
        s_idx = pl.program_id(3)
        n_s = pl.num_programs(3)
        tN = out_ref.shape[1]
        tS = seq_ref.shape[1]

        @pl.when(s_idx == 0)
        def _init():
            out_ref[...] = jnp.zeros_like(out_ref)

        spans = spans_ref[0]                                   # (tN, 2) int32
        starts = jnp.maximum(spans[:, 0:1], 0)                 # (tN, 1)
        ends = jnp.minimum(spans[:, 1:2] - 1, seq_len - 1)     # inclusive, clamped to S-1

        # Global sequence positions covered by this S tile.
        pos = lax.broadcasted_iota(jnp.int32, (tN, tS), 1) + s_idx * tS
        # Exact 0/1 projection in the sequence dtype (lossless even in bf16).
        proj = ((pos >= starts) & (pos <= ends)).astype(seq_ref.dtype)

        seq_blk = seq_ref[0]                                   # (tS, tE)
        if ragged_s:
            # Ragged last S tile: rows >= seq_len hold unspecified (possibly NaN) data.
            # proj is 0 there, but 0*NaN = NaN, so zero the rows explicitly.
            row_pos = lax.broadcasted_iota(jnp.int32, (tS, 1), 0) + s_idx * tS
            seq_blk = jnp.where(row_pos < seq_len, seq_blk, jnp.zeros_like(seq_blk))

        # MXU: (tN, tS) @ (tS, tE) -> (tN, tE), accumulate in f32 directly in out_ref.
        out_ref[0] += jnp.dot(proj, seq_blk, preferred_element_type=jnp.float32)

        @pl.when(s_idx == n_s - 1)
        def _finalize():
            # 1/(width), clamped so padded / degenerate rows (all-zero proj) give 0, not NaN.
            cnt = jnp.maximum(ends - starts + 1, 1).astype(jnp.float32)   # (tN, 1)
            inv = pl.reciprocal(cnt, approx=False)
            out_ref[0] = out_ref[0] * inv * mask_ref[0]

    return kernel


def average_span_extractor(sequence_tensor, span_indices, span_indices_mask=None,
                           *, compute_dtype=None,
                           tile_n=None, tile_e=None, tile_s=None):
    """sequence_tensor: (B, S, E) float, span_indices: (B, N, 2) int (exclusive ends).

    compute_dtype: opt-in narrower dtype for the sequence stream (e.g. jnp.bfloat16);
                   accumulation stays f32. tile_* override tile sizes (testing / tuning).
    """
    B, S, E = sequence_tensor.shape
    N = span_indices.shape[1]

    seq = sequence_tensor
    if compute_dtype is not None and seq.dtype != compute_dtype:
        seq = seq.astype(compute_dtype)
    itemsize = jnp.dtype(seq.dtype).itemsize

    # ---- tile selection -------------------------------------------------------
    # N tile: up to 256 (matches 256-wide MXU on v6e/v7x, minimizes seq re-streaming).
    tN = tile_n if tile_n is not None else (256 if N > 256 else N)
    N_pad = _round_up(N, tN)
    # E tile: full E when small, else 2048 (multiple of 128, lane-dense).
    tE = tile_e if tile_e is not None else (E if E <= 2048 else 2048)
    # S tile: size by bytes (~4 MiB seq block), multiple of 8, bounded by S.
    if tile_s is not None:
        tS = min(tile_s, S)
    else:
        tS = (4 * 1024 * 1024) // max(tE * itemsize, 1)
        tS = max(256, min(4096, tS))
        tS = (tS // 8) * 8
        if tS >= S:
            tS = S
    nN = N_pad // tN
    nE = pl.cdiv(E, tE)
    nS = pl.cdiv(S, tS)
    ragged_s = (S % tS) != 0

    # ---- small side inputs (no sequence padding at all) -----------------------
    spans = span_indices.astype(jnp.int32)
    if span_indices_mask is None:
        mask = jnp.ones((B, N, 1), jnp.float32)
    else:
        mask = span_indices_mask.astype(jnp.float32).reshape(B, N, 1)
    if N_pad != N:
        spans = jnp.pad(spans, ((0, 0), (0, N_pad - N), (0, 0)))
        mask = jnp.pad(mask, ((0, 0), (0, N_pad - N), (0, 0)))

    # ---- VMEM budget (double-buffered seq + resident f32 out block + small refs) ----
    needed = (2 * tS * tE * itemsize          # seq double buffer
              + 2 * tN * tE * 4               # out block (f32)
              + 2 * tN * 3 * 4)               # spans + mask blocks
    vmem_limit = min(max(int(needed * 1.75), 24 << 20), 48 << 20)

    out = pl.pallas_call(
        _make_kernel(S, ragged_s),
        out_shape=jax.ShapeDtypeStruct((B, N_pad, E), jnp.float32),
        grid_spec=pltpu.PrefetchScalarGridSpec(
            num_scalar_prefetch=0,
            grid=(B, nN, nE, nS),
            in_specs=[
                pl.BlockSpec((1, tN, 2), lambda b, n, e, s: (b, n, 0)),
                pl.BlockSpec((1, tN, 1), lambda b, n, e, s: (b, n, 0)),
                pl.BlockSpec((1, tS, tE), lambda b, n, e, s: (b, s, e)),
            ],
            out_specs=pl.BlockSpec((1, tN, tE), lambda b, n, e, s: (b, n, e)),
        ),
        compiler_params=pltpu.CompilerParams(
            dimension_semantics=("parallel", "parallel", "parallel", "arbitrary"),
            vmem_limit_bytes=vmem_limit),
    )(spans, mask, seq)

    if N_pad != N:
        out = out[:, :N, :]
    return out


def _reference(sequence_tensor, span_indices, span_indices_mask=None):
    """Pure-JAX reference mirroring the torch forward exactly."""
    starts = span_indices[..., 0]
    ends = span_indices[..., 1] - 1
    widths = ends - starts
    W = int(jnp.max(widths)) + 1
    rng = jnp.arange(W, dtype=jnp.int32)[None, None, :]
    raw = ends[..., None] - rng
    mask = (rng <= widths[..., None]) & (raw >= 0)
    idx = jnp.maximum(raw, 0)
    emb = jax.vmap(lambda s, i: s[i])(sequence_tensor, idx)          # (B, N, W, E)
    logits = jnp.where(mask, 1.0, -1e32).astype(jnp.float32)
    attn = jax.nn.softmax(logits, axis=-1)
    out = jnp.einsum("bnw,bnwe->bne", attn, emb)
    if span_indices_mask is not None:
        out = out * span_indices_mask[..., None].astype(jnp.float32)
    return out


def _random_spans(key, B, N, S, max_len):
    k_start, k_len = jax.random.split(key)
    starts = jax.random.randint(k_start, (B, N), 0, S - 1)
    lens = jax.random.randint(k_len, (B, N), 1, max_len)
    ends = jnp.minimum(starts + lens, S)
    return jnp.stack([starts, ends], axis=-1).astype(jnp.int32)


if __name__ == "__main__":
    key = jax.random.PRNGKey(0)

    # --- test 1: small shapes, default tiles, with span_indices_mask -----------
    k_seq, k_span, k_mask, key = jax.random.split(key, 4)
    B, S, E, N = 2, 16, 32, 6
    sequence_tensor = jax.random.normal(k_seq, (B, S, E), dtype=jnp.float32)
    span_indices = _random_spans(k_span, B, N, S, 6)
    span_indices_mask = (jax.random.uniform(k_mask, (B, N)) > 0.3).astype(jnp.int32)

    out = jax.jit(average_span_extractor)(sequence_tensor, span_indices, span_indices_mask)
    out = jax.block_until_ready(out)
    ref = _reference(sequence_tensor, span_indices, span_indices_mask)
    assert out.shape == (B, N, E)
    assert jnp.allclose(out, ref, atol=1e-5, rtol=1e-5), (
        f"test1 max abs err {jnp.max(jnp.abs(out - ref))}")

    # --- test 2: forced small tiles -> multi-tile N/E, ragged S, padded N, no mask ---
    k_seq2, k_span2 = jax.random.split(key)
    B2, S2, E2, N2 = 2, 20, 256, 10
    seq2 = jax.random.normal(k_seq2, (B2, S2, E2), dtype=jnp.float32)
    spans2 = _random_spans(k_span2, B2, N2, S2, 9)

    run2 = jax.jit(functools.partial(average_span_extractor,
                                     tile_n=8, tile_e=128, tile_s=8))
    out2 = jax.block_until_ready(run2(seq2, spans2))
    ref2 = _reference(seq2, spans2)
    assert out2.shape == (B2, N2, E2)
    assert jnp.allclose(out2, ref2, atol=1e-5, rtol=1e-5), (
        f"test2 max abs err {jnp.max(jnp.abs(out2 - ref2))}")

    print("KERNEL_OK")
</pallas_src>

<mosaic_0001>
module attributes {stable_mosaic.version = 11 : i64} {
  func.func @kernel(%arg0: i32, %arg1: i32, %arg2: i32, %arg3: i32, %arg4: memref<1x6x2xi32, #tpu.memory_space<vmem>>, %arg5: memref<1x6x1xf32, #tpu.memory_space<vmem>>, %arg6: memref<1x16x32xf32, #tpu.memory_space<vmem>>, %arg7: memref<1x6x32xf32, #tpu.memory_space<vmem>>) attributes {dimension_semantics = [#tpu.dimension_semantics<parallel>, #tpu.dimension_semantics<parallel>, #tpu.dimension_semantics<parallel>, #tpu.dimension_semantics<arbitrary>], iteration_bounds = array<i64: 2, 1, 1, 1>, scalar_prefetch = 0 : i64, scratch_operands = 0 : i64, tpu.core_type = #tpu.core_type<tc>, window_params = [{transform_indices = @transform_0, window_bounds = array<i64: 1, 6, 2>}, {transform_indices = @transform_1, window_bounds = array<i64: 1, 6, 1>}, {transform_indices = @transform_2, window_bounds = array<i64: 1, 16, 32>}, {transform_indices = @transform_3, window_bounds = array<i64: 1, 6, 32>}]} {
    %c0_i32 = arith.constant 0 : i32
    %0 = arith.cmpi eq, %arg3, %c0_i32 : i32
    %1 = arith.extui %0 : i1 to i32
    %c0_i32_0 = arith.constant 0 : i32
    %2 = arith.cmpi ne, %1, %c0_i32_0 : i32
    scf.if %2 {
      %cst_15 = arith.constant 0.000000e+00 : f32
      %36 = vector.broadcast %cst_15 : f32 to vector<1x6x32xf32>
      %c0_16 = arith.constant 0 : index
      %c0_17 = arith.constant 0 : index
      %c0_18 = arith.constant 0 : index
      %37 = vector.load %arg7[%c0_16, %c0_17, %c0_18] : memref<1x6x32xf32, #tpu.memory_space<vmem>>, vector<1x6x32xf32>
      tpu.vector_store %arg7[%c0_16, %c0_17, %c0_18], %36 {strides = array<i32>} : memref<1x6x32xf32, #tpu.memory_space<vmem>>, vector<1x6x32xf32>,
    } else {
    }
    %c0 = arith.constant 0 : index
    %c0_1 = arith.constant 0 : index
    %c0_2 = arith.constant 0 : index
    %3 = vector.load %arg4[%c0, %c0_1, %c0_2] : memref<1x6x2xi32, #tpu.memory_space<vmem>>, vector<1x6x2xi32>
    %4 = vector.shape_cast %3 : vector<1x6x2xi32> to vector<6x2xi32>
    %5 = vector.extract_strided_slice %4 {offsets = [0, 0], sizes = [6, 1], strides = [1, 1]} : vector<6x2xi32> to vector<6x1xi32>
    %c0_i32_3 = arith.constant 0 : i32
    %6 = vector.broadcast %c0_i32_3 : i32 to vector<6x1xi32>
    %7 = arith.maxsi %5, %6 : vector<6x1xi32>
    %8 = vector.extract_strided_slice %4 {offsets = [0, 1], sizes = [6, 1], strides = [1, 1]} : vector<6x2xi32> to vector<6x1xi32>
    %c1_i32 = arith.constant 1 : i32
    %9 = vector.broadcast %c1_i32 : i32 to vector<6x1xi32>
    %10 = arith.subi %8, %9 : vector<6x1xi32>
    %c15_i32 = arith.constant 15 : i32
    %11 = vector.broadcast %c15_i32 : i32 to vector<6x1xi32>
    %12 = arith.minsi %10, %11 : vector<6x1xi32>
    %13 = tpu.iota {dimensions = array<i32: 1>} : vector<6x16xi32>
    %c16_i32 = arith.constant 16 : i32
    %14 = arith.muli %arg3, %c16_i32 : i32
    %15 = vector.broadcast %14 : i32 to vector<6x16xi32>
    %16 = arith.addi %13, %15 : vector<6x16xi32>
    %17 = vector.broadcast %7 : vector<6x1xi32> to vector<6x16xi32>
    %18 = arith.cmpi sge, %16, %17 : vector<6x16xi32>
    %19 = vector.broadcast %12 : vector<6x1xi32> to vector<6x16xi32>
    %20 = arith.cmpi sle, %16, %19 : vector<6x16xi32>
    %21 = arith.andi %18, %20 : vector<6x16xi1>
    %22 = arith.extui %21 : vector<6x16xi1> to vector<6x16xi32>
    %23 = arith.sitofp %22 : vector<6x16xi32> to vector<6x16xf32>
    %c0_4 = arith.constant 0 : index
    %c0_5 = arith.constant 0 : index
    %c0_6 = arith.constant 0 : index
    %24 = vector.load %arg6[%c0_4, %c0_5, %c0_6] : memref<1x16x32xf32, #tpu.memory_space<vmem>>, vector<1x16x32xf32>
    %25 = vector.shape_cast %24 : vector<1x16x32xf32> to vector<16x32xf32>
    %c0_7 = arith.constant 0 : index
    %c0_8 = arith.constant 0 : index
    %c0_9 = arith.constant 0 : index
    %26 = vector.load %arg7[%c0_7, %c0_8, %c0_9] : memref<1x6x32xf32, #tpu.memory_space<vmem>>, vector<1x6x32xf32>
    %27 = vector.shape_cast %26 : vector<1x6x32xf32> to vector<6x32xf32>
    %cst = arith.constant dense<0.000000e+00> : vector<6x32xf32>
    %28 = tpu.matmul %23, %25, %cst {dimension_numbers = #tpu.dot_dimension_numbers<[1], [0], [0], [1], [0, 0, 1, 1], [], []>} : vector<6x16xf32>, vector<16x32xf32>, vector<6x32xf32> -> vector<6x32xf32>
    %29 = arith.addf %27, %28 : vector<6x32xf32>
    %c0_10 = arith.constant 0 : index
    %c0_11 = arith.constant 0 : index
    %c0_12 = arith.constant 0 : index
    %30 = vector.load %arg7[%c0_10, %c0_11, %c0_12] : memref<1x6x32xf32, #tpu.memory_space<vmem>>, vector<1x6x32xf32>
    %31 = vector.shape_cast %30 : vector<1x6x32xf32> to vector<6x32xf32>
    %32 = vector.shape_cast %29 : vector<6x32xf32> to vector<1x6x32xf32>
    tpu.vector_store %arg7[%c0_10, %c0_11, %c0_12], %32 {strides = array<i32>} : memref<1x6x32xf32, #tpu.memory_space<vmem>>, vector<1x6x32xf32>,
    %c0_i32_13 = arith.constant 0 : i32
    %33 = arith.cmpi eq, %arg3, %c0_i32_13 : i32
    %34 = arith.extui %33 : i1 to i32
    %c0_i32_14 = arith.constant 0 : i32
    %35 = arith.cmpi ne, %34, %c0_i32_14 : i32
    scf.if %35 {
      %36 = arith.subi %12, %7 : vector<6x1xi32>
      %c1_i32_15 = arith.constant 1 : i32
      %37 = vector.broadcast %c1_i32_15 : i32 to vector<6x1xi32>
      %38 = arith.addi %36, %37 : vector<6x1xi32>
      %c1_i32_16 = arith.constant 1 : i32
      %39 = vector.broadcast %c1_i32_16 : i32 to vector<6x1xi32>
      %40 = arith.maxsi %38, %39 : vector<6x1xi32>
      %41 = arith.sitofp %40 : vector<6x1xi32> to vector<6x1xf32>
      %42 = tpu.reciprocal %41 : vector<6x1xf32> -> vector<6x1xf32>
      %c0_17 = arith.constant 0 : index
      %c0_18 = arith.constant 0 : index
      %c0_19 = arith.constant 0 : index
      %43 = vector.load %arg7[%c0_17, %c0_18, %c0_19] : memref<1x6x32xf32, #tpu.memory_space<vmem>>, vector<1x6x32xf32>
      %44 = vector.shape_cast %43 : vector<1x6x32xf32> to vector<6x32xf32>
      %45 = vector.broadcast %42 : vector<6x1xf32> to vector<6x32xf32>
      %46 = arith.mulf %44, %45 : vector<6x32xf32>
      %c0_20 = arith.constant 0 : index
      %c0_21 = arith.constant 0 : index
      %c0_22 = arith.constant 0 : index
      %47 = vector.load %arg5[%c0_20, %c0_21, %c0_22] : memref<1x6x1xf32, #tpu.memory_space<vmem>>, vector<1x6x1xf32>
      %48 = vector.shape_cast %47 : vector<1x6x1xf32> to vector<6x1xf32>
      %49 = vector.broadcast %48 : vector<6x1xf32> to vector<6x32xf32>
      %50 = arith.mulf %46, %49 : vector<6x32xf32>
      %c0_23 = arith.constant 0 : index
      %c0_24 = arith.constant 0 : index
      %c0_25 = arith.constant 0 : index
      %51 = vector.load %arg7[%c0_23, %c0_24, %c0_25] : memref<1x6x32xf32, #tpu.memory_space<vmem>>, vector<1x6x32xf32>
      %52 = vector.shape_cast %51 : vector<1x6x32xf32> to vector<6x32xf32>
      %53 = vector.shape_cast %50 : vector<6x32xf32> to vector<1x6x32xf32>
      tpu.vector_store %arg7[%c0_23, %c0_24, %c0_25], %53 {strides = array<i32>} : memref<1x6x32xf32, #tpu.memory_space<vmem>>, vector<1x6x32xf32>,
    } else {
    }
    return
  }
  func.func @transform_0(%arg0: i32, %arg1: i32, %arg2: i32, %arg3: i32) -> (i32, i32, i32) {
    %c0_i32 = arith.constant 0 : i32
    %c0_i32_0 = arith.constant 0 : i32
    return %arg0, %arg1, %c0_i32 : i32, i32, i32
  }
  func.func @transform_1(%arg0: i32, %arg1: i32, %arg2: i32, %arg3: i32) -> (i32, i32, i32) {
    %c0_i32 = arith.constant 0 : i32
    %c0_i32_0 = arith.constant 0 : i32
    return %arg0, %arg1, %c0_i32 : i32, i32, i32
  }
  func.func @transform_2(%arg0: i32, %arg1: i32, %arg2: i32, %arg3: i32) -> (i32, i32, i32) {
    %c0_i32 = arith.constant 0 : i32
    return %arg0, %arg3, %arg2 : i32, i32, i32
  }
  func.func @transform_3(%arg0: i32, %arg1: i32, %arg2: i32, %arg3: i32) -> (i32, i32, i32) {
    %c0_i32 = arith.constant 0 : i32
    return %arg0, %arg1, %arg2 : i32, i32, i32
  }
}

</mosaic_0001>

<llo_original>
// kernel: average_span_extractor.1
$region0: #{average_span_extractor.1}
  #allocation0 [shape = 'u32[]', space=smem, size = 0x4, offset = 0x4, fixed_abs, tag = 'smem constant byte address 0x4 - core index']
  #allocation1 [shape = 'u32[144,128]{1,0:T(1,128)}', space=vmem, size = 0x12000, scoped, tag = 'internal scratch']
  %s0 = inlined_call_operand.vmem [shape: s32[2,6,2], index: 0, kind: input, shape index: {}]
  %s1 = inlined_call_operand.vmem [shape: f32[2,6,1], index: 1, kind: input, shape index: {}]
  %s2 = inlined_call_operand.vmem [shape: f32[2,16,32], index: 2, kind: input, shape index: {}]
  %s3 = inlined_call_operand.vmem [shape: f32[2,6,32], index: 3, kind: output, shape index: {}]
  %s4 = sld [smem:[#allocation0]]
  $region53: #{average_span_extractor.1} parent=0
    _
  %s6 = ssub.s32 1, %s4
  %s7 = scalar_select 0, %s6, %s4
  loop: start=0, step=1, limit=4
  $region2: #{average_span_extractor.1} parent=0 // loop_pre_header
    _
  $region3: #{average_span_extractor.1} parent=0 // loop_header
    %s9 = sphi 0, %s13
    %p10 = scmp.ge.s32.totalorder %s9, 4
    %s16 = sphi 0, %s42
    %s17 = sphi 0, %s38
    %s18 = sphi 0, %s34
    %s19 = sphi 0, %s30
    %s20 = sphi 0, %s16
    %s21 = sphi 0, %s17
    %s22 = sphi 0, %s18
    %s23 = sphi 0, %s19
    %s24 = sphi 0, %s20
    %s25 = sphi 0, %s21
    %s26 = sphi 0, %s22
    %s27 = sphi 0, %s23
    %s47 = sphi 0, %s49
    %s50 = sphi 0, %s47
    %s51 = sphi 0, %s50
    %s67 = sphi 0, %s51
    %s75 = sphi 0, %s77
    %s78 = sphi 0, %s75
    %s79 = sphi 0, %s78
    %s95 = sphi 0, %s79
    %s105 = sphi 0, %s107
    %s108 = sphi 0, %s105
    %s109 = sphi 0, %s108
    %s125 = sphi 0, %s109
    %s135 = sphi 0, %s137
    %s138 = sphi 0, %s135
    %s139 = sphi 0, %s138
    %s155 = sphi 0, %s139
  $region4: #{average_span_extractor.1} parent=0 // loop_header_branch
    %12 = sbr.rel (%p10) target = $region8
  $region5: #{average_span_extractor.1} parent=0 // loop_body
    %s14 = ssub.s32 %s9, 1
    %s15 = ssub.s32 %s9, 2
    %s28 = sadd.s32 1, %s19
    %p29 = scmp.ge.s32.totalorder %s28, 1
    %s30 = scalar_select %p29, 0, %s28
    %s31 = sadd.s32 1, %s18
    %s32 = scalar_select %p29, %s31, %s18
    %p33 = scmp.ge.s32.totalorder %s32, 1
    %s34 = scalar_select %p33, 0, %s32
    %s35 = sadd.s32 1, %s17
    %s36 = scalar_select %p33, %s35, %s17
    %p37 = scmp.ge.s32.totalorder %s36, 1
    %s38 = scalar_select %p37, 0, %s36
    %s39 = sadd.s32 1, %s16
    %s40 = scalar_select %p37, %s39, %s16
    %p41 = scmp.ge.s32.totalorder %s40, 2
    %s42 = scalar_select %p41, 0, %s40
    %s43 = ssub.s32 %s16, %s42
    %s44 = ssub.s32 %s17, %s38
    %s45 = sor.u32 %s43, %s44
    %p46 = scmp.eq.s32.totalorder %s45, 0
    %s48 = sadd.s32 %s47, 1
    %s49 = scalar_select %p46, %s47, %s48
    %p52 = pneg %p46
    %p53 = scmp.eq.s32.totalorder %s9, 1
    %p54 = por %p52, %p53
    %p55 = scmp.ne.s32.totalorder %s47, %s50
    %p56 = scmp.eq.s32.totalorder %s9, 0
    %p57 = por %p55, %p56
    %p58 = scmp.ne.s32.totalorder %s47, %s50
    %p59 = scmp.eq.s32.totalorder %s14, 1
    %p60 = por %p58, %p59
    %p61 = scmp.ne.s32.totalorder %s50, %s51
    %p62 = scmp.eq.s32.totalorder %s14, 0
    %p63 = por %p61, %p62
    %p64 = scmp.ne.s32.totalorder %s50, %s51
    %p65 = scmp.eq.s32.totalorder %s15, 1
    %p66 = por %p64, %p65
    %p68 = scmp.ne.s32.totalorder %s51, %s67
    %p69 = scmp.eq.s32.totalorder %s15, 0
    %p70 = por %p68, %p69
    %s71 = ssub.s32 %s16, %s42
    %s72 = ssub.s32 %s17, %s38
    %s73 = sor.u32 %s71, %s72
    %p74 = scmp.eq.s32.totalorder %s73, 0
    %s76 = sadd.s32 %s75, 1
    %s77 = scalar_select %p74, %s75, %s76
    %p80 = pneg %p74
    %p81 = scmp.eq.s32.totalorder %s9, 1
    %p82 = por %p80, %p81
    %p83 = scmp.ne.s32.totalorder %s75, %s78
    %p84 = scmp.eq.s32.totalorder %s9, 0
    %p85 = por %p83, %p84
    %p86 = scmp.ne.s32.totalorder %s75, %s78
    %p87 = scmp.eq.s32.totalorder %s14, 1
    %p88 = por %p86, %p87
    %p89 = scmp.ne.s32.totalorder %s78, %s79
    %p90 = scmp.eq.s32.totalorder %s14, 0
    %p91 = por %p89, %p90
    %p92 = scmp.ne.s32.totalorder %s78, %s79
    %p93 = scmp.eq.s32.totalorder %s15, 1
    %p94 = por %p92, %p93
    %p96 = scmp.ne.s32.totalorder %s79, %s95
    %p97 = scmp.eq.s32.totalorder %s15, 0
    %p98 = por %p96, %p97
    %s99 = ssub.s32 %s16, %s42
    %s100 = ssub.s32 %s19, %s30
    %s101 = sor.u32 %s99, %s100
    %s102 = ssub.s32 %s18, %s34
    %s103 = sor.u32 %s101, %s102
    %p104 = scmp.eq.s32.totalorder %s103, 0
    %s106 = sadd.s32 %s105, 1
    %s107 = scalar_select %p104, %s105, %s106
    %p110 = pneg %p104
    %p111 = scmp.eq.s32.totalorder %s9, 1
    %p112 = por %p110, %p111
    %p113 = scmp.ne.s32.totalorder %s105, %s108
    %p114 = scmp.eq.s32.totalorder %s9, 0
    %p115 = por %p113, %p114
    %p116 = scmp.ne.s32.totalorder %s105, %s108
    %p117 = scmp.eq.s32.totalorder %s14, 1
    %p118 = por %p116, %p117
    %p119 = scmp.ne.s32.totalorder %s108, %s109
    %p120 = scmp.eq.s32.totalorder %s14, 0
    %p121 = por %p119, %p120
    %p122 = scmp.ne.s32.totalorder %s108, %s109
    %p123 = scmp.eq.s32.totalorder %s15, 1
    %p124 = por %p122, %p123
    %p126 = scmp.ne.s32.totalorder %s109, %s125
    %p127 = scmp.eq.s32.totalorder %s15, 0
    %p128 = por %p126, %p127
    %s129 = ssub.s32 %s16, %s42
    %s130 = ssub.s32 %s17, %s38
    %s131 = sor.u32 %s129, %s130
    %s132 = ssub.s32 %s18, %s34
    %s133 = sor.u32 %s131, %s132
    %p134 = scmp.eq.s32.totalorder %s133, 0
    %s136 = sadd.s32 %s135, 1
    %s137 = scalar_select %p134, %s135, %s136
    %p140 = pneg %p134
    %p141 = scmp.eq.s32.totalorder %s9, 1
    %p142 = por %p140, %p141
    %p143 = scmp.ne.s32.totalorder %s135, %s138
    %p144 = scmp.eq.s32.totalorder %s9, 0
    %p145 = por %p143, %p144
    %p146 = scmp.ne.s32.totalorder %s135, %s138
    %p147 = scmp.eq.s32.totalorder %s14, 1
    %p148 = por %p146, %p147
    %p149 = scmp.ne.s32.totalorder %s138, %s139
    %p150 = scmp.eq.s32.totalorder %s14, 0
    %p151 = por %p149, %p150
    %p152 = scmp.ne.s32.totalorder %s138, %s139
    %p153 = scmp.eq.s32.totalorder %s15, 1
    %p154 = por %p152, %p153
    %p156 = scmp.ne.s32.totalorder %s139, %s155
    %p157 = scmp.eq.s32.totalorder %s15, 0
    %p158 = por %p156, %p157
    %p159 = scmp.le.s32.totalorder 1, %s9
    %p160 = scmp.lt.s32.totalorder %s9, 3
    %p161 = pnand %p159, %p160
    %p162 = pneg %p161
    // Predicated region
    $region9: #{average_span_extractor.1} parent=5 // pred_check
      _
    $region10: #{average_span_extractor.1} parent=5 // pred_check_branch
      %164 = sbr.rel (%p161) target = $region12
    $region11: #{average_span_extractor.1} parent=5 // pred_region
      %s165 = ssub.s32 %s9, 1
    $region12: #{average_span_extractor.1} parent=5 // pred_fallthru
      _
    %p166 = scmp.lt.s32.totalorder %s9, 2
    // Predicated region
    $region13: #{average_span_extractor.1} parent=5 // pred_check
      %p167 = pneg %p166
    $region14: #{average_span_extractor.1} parent=5 // pred_check_branch
      %169 = sbr.rel (%p167) target = $region16
    $region15: #{average_span_extractor.1} parent=5 // pred_region
      // Predicated region
      $region17: #{average_span_extractor.1} parent=15 // pred_check
        %p170 = pneg %p57
      $region18: #{average_span_extractor.1} parent=15 // pred_check_branch
        %172 = sbr.rel (%p170) target = $region20
      $region19: #{average_span_extractor.1} parent=15 // pred_region
        %p173 = scmp.lt.s32.totalorder %s16, 1
        %s174 = scalar_select %p173, %s16, 1
        %p175 = scmp.lt.s32.totalorder %s17, 0
        %s176 = scalar_select %p175, %s17, 0
        %s177 = sadd.s32 %s176, %s174
        %s178 = smul.addr %s177, 8
        %s179 = scalar_lea.vmem %s0, %s178
      $region20: #{average_span_extractor.1} parent=15 // pred_fallthru
        _
      // Predicated region
      $region21: #{average_span_extractor.1} parent=15 // pred_check
        %p180 = pneg %p85
      $region22: #{average_span_extractor.1} parent=15 // pred_check_branch
        %182 = sbr.rel (%p180) target = $region24
      $region23: #{average_span_extractor.1} parent=15 // pred_region
        %p183 = scmp.lt.s32.totalorder %s16, 1
        %s184 = scalar_select %p183, %s16, 1
        %p185 = scmp.lt.s32.totalorder %s17, 0
        %s186 = scalar_select %p185, %s17, 0
        %s187 = sadd.s32 %s186, %s184
        %s188 = smul.addr %s187, 8
        %s189 = scalar_lea.vmem %s1, %s188
      $region24: #{average_span_extractor.1} parent=15 // pred_fallthru
        _
      // Predicated region
      $region25: #{average_span_extractor.1} parent=15 // pred_check
        %p190 = pneg %p115
      $region26: #{average_span_extractor.1} parent=15 // pred_check_branch
        %192 = sbr.rel (%p190) target = $region28
      $region27: #{average_span_extractor.1} parent=15 // pred_region
        %s193 = smul.u32 2, %s19
        %p194 = scmp.lt.s32.totalorder %s16, 1
        %s195 = scalar_select %p194, %s16, 1
        %p196 = scmp.lt.s32.totalorder %s193, 1
        %s197 = scalar_select %p196, %s193, 1
        %p198 = scmp.lt.s32.totalorder %s18, 0
        %s199 = scalar_select %p198, %s18, 0
        %s200 = sadd.s32 %s199, %s197
        %s201 = smul.addr %s195, 2
        %s202 = sadd.s32 %s200, %s201
        %s203 = smul.addr %s202, 8
        %s204 = scalar_lea.vmem %s2, %s203
        %s205 = smul.u32 2, %s19
      $region28: #{average_span_extractor.1} parent=15 // pred_fallthru
        _
    $region16: #{average_span_extractor.1} parent=5 // pred_fallthru
      _
    %p206 = scmp.le.s32.totalorder 1, %s9
    %p207 = scmp.lt.s32.totalorder %s9, 3
    %p208 = pnand %p206, %p207
    %p209 = pneg %p208
    // Predicated region
    $region29: #{average_span_extractor.1} parent=5 // pred_check
      _
    $region30: #{average_span_extractor.1} parent=5 // pred_check_branch
      %211 = sbr.rel (%p208) target = $region32
    $region31: #{average_span_extractor.1} parent=5 // pred_region
      %s212 = ssub.s32 %s9, 1
      %p213 = scmp.lt.s32.totalorder %s20, 1
      %s214 = scalar_select %p213, %s20, 1
      %p215 = scmp.lt.s32.totalorder %s21, 0
      %s216 = scalar_select %p215, %s21, 0
      %s217 = sadd.s32 %s216, %s214
      %s218 = smul.addr %s217, 8
      %s219 = scalar_lea.vmem %s0, %s218
      %p220 = pneg %p63
      %p221 = pneg %p60
      %p222 = scmp.lt.s32.totalorder %s20, 1
      %s223 = scalar_select %p222, %s20, 1
      %p224 = scmp.lt.s32.totalorder %s21, 0
      %s225 = scalar_select %p224, %s21, 0
      %s226 = sadd.s32 %s225, %s223
      %s227 = smul.addr %s226, 8
      %s228 = scalar_lea.vmem %s1, %s227
      %p229 = pneg %p91
      %p230 = pneg %p88
      %s231 = smul.u32 2, %s23
      %p232 = scmp.lt.s32.totalorder %s20, 1
      %s233 = scalar_select %p232, %s20, 1
      %p234 = scmp.lt.s32.totalorder %s231, 1
      %s235 = scalar_select %p234, %s231, 1
      %p236 = scmp.lt.s32.totalorder %s22, 0
      %s237 = scalar_select %p236, %s22, 0
      %s238 = sadd.s32 %s237, %s235
      %s239 = smul.addr %s233, 2
      %s240 = sadd.s32 %s238, %s239
      %s241 = smul.addr %s240, 8
      %s242 = scalar_lea.vmem %s2, %s241
      %p243 = pneg %p121
      %p244 = pneg %p118
      %p245 = pneg %p151
      %p246 = pneg %p148
      %p247 = scmp.lt.s32.totalorder %s20, 1
      %s248 = scalar_select %p247, %s20, 1
      %p249 = scmp.lt.s32.totalorder %s21, 0
      %s250 = scalar_select %p249, %s21, 0
      %p251 = scmp.lt.s32.totalorder %s22, 0
      %s252 = scalar_select %p251, %s22, 0
      %s253 = sadd.s32 %s252, %s250
      %s254 = sadd.s32 %s253, %s248
      %s255 = smul.addr %s254, 8
      %s256 = scalar_lea.vmem %s3, %s255
      %p257 = scmp.lt.s32.totalorder %s20, 1
      %s258 = scalar_select %p257, %s20, 1
      %p259 = scmp.lt.s32.totalorder %s21, 0
      %s260 = scalar_select %p259, %s21, 0
      %s261 = sadd.s32 %s260, %s258
      %s262 = smul.addr %s261, 8
      %s263 = scalar_lea.vmem %s0, %s262
      %p264 = scmp.lt.s32.totalorder %s20, 1
      %s265 = scalar_select %p264, %s20, 1
      %p266 = scmp.lt.s32.totalorder %s21, 0
      %s267 = scalar_select %p266, %s21, 0
      %s268 = sadd.s32 %s267, %s265
      %s269 = smul.addr %s268, 8
      %s270 = scalar_lea.vmem %s1, %s269
      %s271 = smul.u32 2, %s23
      %p272 = scmp.lt.s32.totalorder %s20, 1
      %s273 = scalar_select %p272, %s20, 1
      %p274 = scmp.lt.s32.totalorder %s271, 1
      %s275 = scalar_select %p274, %s271, 1
      %p276 = scmp.lt.s32.totalorder %s22, 0
      %s277 = scalar_select %p276, %s22, 0
      %s278 = sadd.s32 %s277, %s275
      %s279 = smul.addr %s273, 2
      %s280 = sadd.s32 %s278, %s279
      %s281 = smul.addr %s280, 8
      %s282 = scalar_lea.vmem %s2, %s281
      %s283 = smul.u32 2, %s23
      %p284 = scmp.lt.s32.totalorder %s20, 1
      %s285 = scalar_select %p284, %s20, 1
      %p286 = scmp.lt.s32.totalorder %s21, 0
      %s287 = scalar_select %p286, %s21, 0
      %p288 = scmp.lt.s32.totalorder %s22, 0
      %s289 = scalar_select %p288, %s22, 0
      %s290 = sadd.s32 %s289, %s287
      %s291 = sadd.s32 %s290, %s285
      %s292 = smul.addr %s291, 8
      %s293 = scalar_lea.vmem %s3, %s292
      %p294 = scmp.eq.s32.totalorder %s23, 0
      // Predicated region
      $region33: #{average_span_extractor.1} parent=31 // pred_check
        %p295 = pneg %p294
      $region34: #{average_span_extractor.1} parent=31 // pred_check_branch
        %297 = sbr.rel (%p295) target = $region36
      $region35: #{average_span_extractor.1} parent=31 // pred_region
        %vm298 = vcmask 259072
        %299 = vst.msk [vmem:[%s293] sm:$0x3f] %vm298, 0.0
      $region36: #{average_span_extractor.1} parent=31 // pred_fallthru
        _
      %v300 = vld [vmem:[%s263] sm:$0x3f]
      %vm301 = vcmp.gt.s32.totalorder %v300, 0
      %v302 = vsel %vm301, %v300, 0
      %v303 = vsub.s32 %v300, 1
      %vm304 = vcmp.lt.s32.totalorder %v303, 15
      %v305 = vsel %vm304, %v303, 15
      %v306 = vlaneseq
      %v307 = vand.u32 %v306, 127
      %s308 = smul.u32 %s23, 16
      %v309 = vstv %s308
      %v310 = vadd.s32 %v307, %v309
      %311 = vset.pattern.permute.xlu0 0
      %312 = vperm.xlu0 %311, %v302
      %v313 = vpop.permute.xlu0 %312
      %vm314 = vcmp.ge.s32.totalorder %v310, %v313
      %315 = vset.pattern.permute.xlu0 1
      %316 = vperm.xlu0 %315, %v305
      %v317 = vpop.permute.xlu0 %316
      %vm318 = vcmp.le.s32.totalorder %v310, %v317
      %vm319 = vmand %vm314, %vm318
      %v320 = vsel %vm319, 1, 0
      %v321 = vcvt.s32.f32 %v320
      %v322 = vld [vmem:[%s282] sm:$0xff]
      %v323 = vld [vmem:[%s282 + $0x8] sm:$0xff]
      %v324 = vld [vmem:[%s293] sm:$0x3f]
      %vm325 = vcmask 130048
      %v327 = vsel %vm325, %v321, 0
      %329 = vmatprep.subr.mxu0 0.0
      %330 = vmatpush1.msra.mxu0 %v322
      %331 = vmatprep.subr.mxu0 0.0
      %332 = vmatpush1.msra.mxu0 %v323
      %333 = vmatprep.subr.mxu0 0.0
      %334 = vmatpush1.msra.mxu0 0.0
      %335 = vmatprep.subr.mxu0 0.0
      %336 = vmatpush1.msra.mxu0 0.0
      %337 = vmatprep.subr.mxu0 0.0
      %338 = vmatpush1.msra.mxu0 0.0
      %339 = vmatprep.subr.mxu0 0.0
      %340 = vmatpush1.msra.mxu0 0.0
      %341 = vmatprep.subr.mxu0 0.0
      %342 = vmatpush1.msra.mxu0 0.0
      %343 = vmatprep.subr.mxu0 0.0
      %344 = vmatpush1.msra.mxu0 0.0
      %345 = vmatprep.subr.mxu0 0.0
      %346 = vmatpush1.msra.mxu0 0.0
      %347 = vmatprep.subr.mxu0 0.0
      %348 = vmatpush1.msra.mxu0 0.0
      %349 = vmatprep.subr.mxu0 0.0
      %350 = vmatpush1.msra.mxu0 0.0
      %351 = vmatprep.subr.mxu0 0.0
      %352 = vmatpush1.msra.mxu0 0.0
      %353 = vmatprep.subr.mxu0 0.0
      %354 = vmatpush1.msra.mxu0 0.0
      %355 = vmatprep.subr.mxu0 0.0
      %356 = vmatpush1.msra.mxu0 0.0
      %357 = vmatprep.subr.mxu0 0.0
      %358 = vmatpush1.msra.mxu0 0.0
      %359 = vmatprep.subr.mxu0 0.0
      %360 = vmatpush1.msra.mxu0 0.0
      %361 = vmatprep.subr.mxu0 0.0
      %362 = vmatpush1.msra.mxu0 0.0
      %363 = vmatprep.subr.mxu0 0.0
      %364 = vmatpush1.msra.mxu0 0.0
      %365 = vmatprep.subr.mxu0 0.0
      %366 = vmatpush1.msra.mxu0 0.0
      %367 = vmatprep.subr.mxu0 0.0
      %368 = vmatpush1.msra.mxu0 0.0
      %369 = vmatprep.subr.mxu0 0.0
      %370 = vmatpush1.msra.mxu0 0.0
      %371 = vmatprep.subr.mxu0 0.0
      %372 = vmatpush1.msra.mxu0 0.0
      %373 = vmatprep.subr.mxu0 0.0
      %374 = vmatpush1.msra.mxu0 0.0
      %375 = vmatprep.subr.mxu0 0.0
      %376 = vmatpush1.msra.mxu0 0.0
      %377 = vmatprep.subr.mxu0 0.0
      %378 = vmatpush1.msra.mxu0 0.0
      %379 = vmatprep.subr.mxu0 0.0
      %380 = vmatpush1.msra.mxu0 0.0
      %381 = vmatprep.subr.mxu0 0.0
      %382 = vmatpush1.msra.mxu0 0.0
      %383 = vmatprep.subr.mxu0 0.0
      %384 = vmatpush1.msra.mxu0 0.0
      %385 = vmatprep.subr.mxu0 0.0
      %386 = vmatpush1.msra.mxu0 0.0
      %387 = vmatprep.subr.mxu0 0.0
      %388 = vmatpush1.msra.mxu0 0.0
      %389 = vmatprep.subr.mxu0 0.0
      %390 = vmatpush1.msra.mxu0 0.0
      %391 = vmatprep.subr.mxu0 0.0
      %392 = vmatpush1.msra.mxu0 0.0
      %393 = vmatprep.mubr.f32.mxu0 0.0
      %394 = vmatmul.mubr.f32.gmra.mrb[0].mxu0 %v327
      %v395 = vpop.f32.mrb[0].mxu0
      %v396 = vadd.f32 0.0, %v395
      %v397 = vpop.f32.mrb[0].mxu0
      %398 = vdwg.mxu0
      %v399 = vadd.f32 %v324, %v396
      %vm400 = vcmask 259072
      %401 = vst.msk [vmem:[%s293] sm:$0x3f] %vm400, %v399
      // Predicated region
      $region37: #{average_span_extractor.1} parent=31 // pred_check
        %p402 = pneg %p294
      $region38: #{average_span_extractor.1} parent=31 // pred_check_branch
        %404 = sbr.rel (%p402) target = $region40
      $region39: #{average_span_extractor.1} parent=31 // pred_region
        %405 = vrot.lane.b32.xlu0 %v302, 1
        %v406 = vpop.permute.xlu0 %405
        %v407 = vsub.s32 %v305, %v406
        %v408 = vadd.s32 %v407, 1
        %vm409 = vcmp.gt.s32.totalorder %v408, 1
        %v410 = vsel %vm409, %v408, 1
        %v411 = vcvt.s32.f32 %v410
        %v412 = vrcp.pop %v411
        %v413 = vld [vmem:[%s293] sm:$0x3f]
        %415 = vset.pattern.permute.xlu0 1
        %416 = vperm.xlu0 %415, %v412
        %v417 = vpop.permute.xlu0 %416
        %v419 = vmul.f32 %v413, %v417
        %v420 = vld [vmem:[%s270] sm:$0x3f]
        %422 = vset.pattern.permute.xlu0 0
        %423 = vperm.xlu0 %422, %v420
        %v424 = vpop.permute.xlu0 %423
        %v426 = vmul.f32 %v419, %v424
        %427 = vst.msk [vmem:[%s293] sm:$0x3f] %vm400, %v426
      $region40: #{average_span_extractor.1} parent=31 // pred_fallthru
        _
      %p428 = scmp.lt.s32.totalorder %s20, 1
      %s429 = scalar_select %p428, %s20, 1
      %p430 = scmp.lt.s32.totalorder %s21, 0
      %s431 = scalar_select %p430, %s21, 0
      %p432 = scmp.lt.s32.totalorder %s22, 0
      %s433 = scalar_select %p432, %s22, 0
      %s434 = sadd.s32 %s433, %s431
      %s435 = sadd.s32 %s434, %s429
      %s436 = smul.addr %s435, 8
      %s437 = scalar_lea.vmem %s3, %s436
      // Predicated region
      $region41: #{average_span_extractor.1} parent=31 // pred_check
        %p438 = pneg %p148
      $region42: #{average_span_extractor.1} parent=31 // pred_check_branch
        %440 = sbr.rel (%p438) target = $region44
      $region43: #{average_span_extractor.1} parent=31 // pred_region
        _
      $region44: #{average_span_extractor.1} parent=31 // pred_fallthru
        _
    $region32: #{average_span_extractor.1} parent=5 // pred_fallthru
      _
    %p441 = scmp.le.s32.totalorder 2, %s9
    // Predicated region
    $region45: #{average_span_extractor.1} parent=5 // pred_check
      %p442 = pneg %p441
    $region46: #{average_span_extractor.1} parent=5 // pred_check_branch
      %444 = sbr.rel (%p442) target = $region48
    $region47: #{average_span_extractor.1} parent=5 // pred_region
      %s445 = ssub.s32 %s9, 2
      // Predicated region
      $region49: #{average_span_extractor.1} parent=47 // pred_check
        %p446 = pneg %p154
      $region50: #{average_span_extractor.1} parent=47 // pred_check_branch
        %448 = sbr.rel (%p446) target = $region52
      $region51: #{average_span_extractor.1} parent=47 // pred_region
        %p449 = scmp.lt.s32.totalorder %s24, 1
        %s450 = scalar_select %p449, %s24, 1
        %p451 = scmp.lt.s32.totalorder %s25, 0
        %s452 = scalar_select %p451, %s25, 0
        %p453 = scmp.lt.s32.totalorder %s26, 0
        %s454 = scalar_select %p453, %s26, 0
        %s455 = sadd.s32 %s454, %s452
        %s456 = sadd.s32 %s455, %s450
        %s457 = smul.addr %s456, 8
        %s458 = scalar_lea.vmem %s3, %s457
      $region52: #{average_span_extractor.1} parent=47 // pred_fallthru
        _
    $region48: #{average_span_extractor.1} parent=5 // pred_fallthru
      _
  $region6: #{average_span_extractor.1} parent=0 // loop_footer
    %s13 = sadd.s32 1, %s9
  $region7: #{average_span_extractor.1} parent=0 // loop_footer_branch
    %8 = sbr.rel target = $region3
  $region8: #{average_span_extractor.1} parent=0 // loop_exit
    _

</llo_original>
